<compile_context>
chip_gen: v6e
topology: v6e:2x2x1
jax: 0.10.0
libtpu: 0.0.40
codegen_flags: <defaults>
</compile_context>

<pallas_src>
import jax
import jax.numpy as jnp
import numpy as np
from jax.experimental import pallas as pl
from jax.experimental.pallas import tpu as pltpu


def _cnn1d_last_kernel(win_ref, w_ref, b_ref, fcw_ref, fcb_ref, o_ref):
    # win_ref : (TB, KW)   im2col window for the last conv output position
    # w_ref   : (KW, H)    folded conv weight (only taps hitting real samples)
    # b_ref   : (1, H)     conv bias
    # fcw_ref : (1, H)     fc weight row
    # fcb_ref : (1,)       fc bias scalar (SMEM)
    # o_ref   : (TB, 1)
    h = jnp.dot(win_ref[...], w_ref[...],
                preferred_element_type=jnp.float32)          # single MXU matmul
    h = jnp.maximum(h + b_ref[...], 0.0)                     # bias + ReLU (VPU)
    # FC has a single output unit: lane reduction instead of an N=1 MXU matmul.
    out = jnp.sum(h * fcw_ref[...], axis=-1, keepdims=True) + fcb_ref[0]
    o_ref[...] = out.astype(o_ref.dtype)


def cnn1d_forward(x, conv_w, conv_b, fc_w, fc_b, *, batch_block=128):
    """x: (B, L, Cin) f32 (torch layout before transpose(1,2)).
    conv_w: (H, Cin, K) torch Conv1d layout. fc_w: (1, H). fc_b: (1,). Returns (B, 1)."""
    B, L, Cin = x.shape
    H, _, K = conv_w.shape
    assert K % 2 == 1, "even kernel_size changes PyTorch's output length under padding=K//2"
    p = K // 2
    kw = p + 1                       # taps that touch real data at the last output position
    assert L >= kw, "sequence too short for the last-position window"
    KW = kw * Cin

    # ---- tiny wrapper-side layout plumbing (replaces the old full-sequence pad) ----
    win = x[:, L - kw:, :].reshape(B, KW).astype(jnp.float32)                    # (B, KW)
    # w_fold[k*Cin + c, h] = conv_w[h, c, k] for k = 0..p (taps k > p only see zero pad).
    w_fold = jnp.transpose(conv_w[:, :, :kw], (2, 1, 0)).reshape(KW, H)
    w_fold = w_fold.astype(jnp.float32)                                          # (KW, H)
    b = conv_b.reshape(1, H).astype(jnp.float32)
    fcw = fc_w.reshape(1, H).astype(jnp.float32)
    fcb = fc_b.reshape(1).astype(jnp.float32)

    TB = B if B <= batch_block else batch_block
    grid = (pl.cdiv(B, TB),)

    return pl.pallas_call(
        _cnn1d_last_kernel,
        out_shape=jax.ShapeDtypeStruct((B, 1), jnp.float32),
        grid=grid,
        in_specs=[
            pl.BlockSpec((TB, KW), lambda i: (i, 0)),        # per-batch-block window
            pl.BlockSpec((KW, H), lambda i: (0, 0)),         # folded conv weight (resident)
            pl.BlockSpec((1, H), lambda i: (0, 0)),          # conv bias
            pl.BlockSpec((1, H), lambda i: (0, 0)),          # fc weight row
            pl.BlockSpec(memory_space=pltpu.MemorySpace.SMEM),  # fc bias scalar
        ],
        out_specs=pl.BlockSpec((TB, 1), lambda i: (i, 0)),
        compiler_params=pltpu.CompilerParams(
            dimension_semantics=("parallel",)),              # shards batch across v7x TCs
    )(win, w_fold, b, fcw, fcb)


def cnn1d_reference(x, conv_w, conv_b, fc_w, fc_b):
    """Pure-JAX reference mirroring the PyTorch forward exactly."""
    p = conv_w.shape[-1] // 2
    xt = jnp.transpose(x, (0, 2, 1))                          # (B, Cin, L)
    y = jax.lax.conv_general_dilated(
        xt, conv_w, window_strides=(1,), padding=[(p, p)],
        dimension_numbers=("NCH", "OIH", "NCH"))
    y = y + conv_b[None, :, None]
    y = jnp.maximum(y, 0.0)                                   # (B, H, L)
    last = y[:, :, -1]                                        # (B, H)
    return last @ fc_w.T + fc_b                               # (B, 1)


if __name__ == "__main__":
    B, L = 2, 8
    input_channels, hidden_channels, kernel_size = 1, 32, 3

    key = jax.random.PRNGKey(0)
    k_x, k_cw, k_cb, k_fw, k_fb = jax.random.split(key, 5)

    x = jax.random.normal(k_x, (B, L, input_channels), dtype=jnp.float32)
    conv_w = 0.1 * jax.random.normal(
        k_cw, (hidden_channels, input_channels, kernel_size), dtype=jnp.float32)
    conv_b = 0.1 * jax.random.normal(k_cb, (hidden_channels,), dtype=jnp.float32)
    fc_w = 0.1 * jax.random.normal(k_fw, (1, hidden_channels), dtype=jnp.float32)
    fc_b = 0.1 * jax.random.normal(k_fb, (1,), dtype=jnp.float32)

    out = cnn1d_forward(x, conv_w, conv_b, fc_w, fc_b)
    out = jax.block_until_ready(out)

    ref = jax.block_until_ready(cnn1d_reference(x, conv_w, conv_b, fc_w, fc_b))
    np.testing.assert_allclose(np.asarray(out), np.asarray(ref), rtol=1e-5, atol=1e-5)

    print("KERNEL_OK")
</pallas_src>

<mosaic_0001>
module attributes {stable_mosaic.version = 11 : i64} {
  func.func @_cnn1d_last_kernel(%arg0: i32, %arg1: memref<2x2xf32, #tpu.memory_space<vmem>>, %arg2: memref<2x32xf32, #tpu.memory_space<vmem>>, %arg3: memref<1x32xf32, #tpu.memory_space<vmem>>, %arg4: memref<1x32xf32, #tpu.memory_space<vmem>>, %arg5: memref<1xf32, #tpu.memory_space<smem>>, %arg6: memref<2x1xf32, #tpu.memory_space<vmem>>) attributes {dimension_semantics = [#tpu.dimension_semantics<parallel>], iteration_bounds = array<i64: 1>, scalar_prefetch = 0 : i64, scratch_operands = 0 : i64, tpu.core_type = #tpu.core_type<tc>, window_params = [{transform_indices = @transform_0, window_bounds = array<i64: 2, 2>}, {pipeline_mode = #tpu.pipeline_mode<synchronous>, transform_indices = @transform_1, window_bounds = array<i64: 2, 32>}, {pipeline_mode = #tpu.pipeline_mode<synchronous>, transform_indices = @transform_2, window_bounds = array<i64: 1, 32>}, {pipeline_mode = #tpu.pipeline_mode<synchronous>, transform_indices = @transform_3, window_bounds = array<i64: 1, 32>}, {transform_indices = @transform_4, window_bounds = array<i64: 1>}, {transform_indices = @transform_5, window_bounds = array<i64: 2, 1>}]} {
    %c0 = arith.constant 0 : index
    %c0_0 = arith.constant 0 : index
    %0 = vector.load %arg1[%c0, %c0_0] : memref<2x2xf32, #tpu.memory_space<vmem>>, vector<2x2xf32>
    %c0_1 = arith.constant 0 : index
    %c0_2 = arith.constant 0 : index
    %1 = vector.load %arg2[%c0_1, %c0_2] : memref<2x32xf32, #tpu.memory_space<vmem>>, vector<2x32xf32>
    %cst = arith.constant dense<0.000000e+00> : vector<2x32xf32>
    %2 = tpu.matmul %0, %1, %cst {dimension_numbers = #tpu.dot_dimension_numbers<[1], [0], [0], [1], [0, 0, 1, 1], [], []>} : vector<2x2xf32>, vector<2x32xf32>, vector<2x32xf32> -> vector<2x32xf32>
    %c0_3 = arith.constant 0 : index
    %c0_4 = arith.constant 0 : index
    %3 = vector.load %arg3[%c0_3, %c0_4] : memref<1x32xf32, #tpu.memory_space<vmem>>, vector<1x32xf32>
    %4 = vector.broadcast %3 : vector<1x32xf32> to vector<2x32xf32>
    %5 = arith.addf %2, %4 : vector<2x32xf32>
    %cst_5 = arith.constant 0.000000e+00 : f32
    %6 = vector.broadcast %cst_5 : f32 to vector<2x32xf32>
    %7 = arith.maximumf %5, %6 : vector<2x32xf32>
    %c0_6 = arith.constant 0 : index
    %c0_7 = arith.constant 0 : index
    %8 = vector.load %arg4[%c0_6, %c0_7] : memref<1x32xf32, #tpu.memory_space<vmem>>, vector<1x32xf32>
    %9 = vector.broadcast %8 : vector<1x32xf32> to vector<2x32xf32>
    %10 = arith.mulf %7, %9 : vector<2x32xf32>
    %cst_8 = arith.constant dense<0.000000e+00> : vector<2xf32>
    %11 = vector.multi_reduction <add>, %10, %cst_8 [1] : vector<2x32xf32> to vector<2xf32>
    %12 = vector.shape_cast %11 : vector<2xf32> to vector<2x1xf32>
    %c0_9 = arith.constant 0 : index
    %13 = memref.load %arg5[%c0_9] : memref<1xf32, #tpu.memory_space<smem>>
    %14 = vector.broadcast %13 : f32 to vector<2x1xf32>
    %15 = arith.addf %12, %14 : vector<2x1xf32>
    %c0_10 = arith.constant 0 : index
    %c0_11 = arith.constant 0 : index
    %16 = vector.load %arg6[%c0_10, %c0_11] : memref<2x1xf32, #tpu.memory_space<vmem>>, vector<2x1xf32>
    tpu.vector_store %arg6[%c0_10, %c0_11], %15 {strides = array<i32>} : memref<2x1xf32, #tpu.memory_space<vmem>>, vector<2x1xf32>,
    return
  }
  func.func @transform_0(%arg0: i32) -> (i32, i32) {
    %c0_i32 = arith.constant 0 : i32
    %c0_i32_0 = arith.constant 0 : i32
    return %arg0, %c0_i32 : i32, i32
  }
  func.func @transform_1(%arg0: i32) -> (i32, i32) {
    %c0_i32 = arith.constant 0 : i32
    %c0_i32_0 = arith.constant 0 : i32
    %c0_i32_1 = arith.constant 0 : i32
    return %c0_i32, %c0_i32_0 : i32, i32
  }
  func.func @transform_2(%arg0: i32) -> (i32, i32) {
    %c0_i32 = arith.constant 0 : i32
    %c0_i32_0 = arith.constant 0 : i32
    %c0_i32_1 = arith.constant 0 : i32
    return %c0_i32, %c0_i32_0 : i32, i32
  }
  func.func @transform_3(%arg0: i32) -> (i32, i32) {
    %c0_i32 = arith.constant 0 : i32
    %c0_i32_0 = arith.constant 0 : i32
    %c0_i32_1 = arith.constant 0 : i32
    return %c0_i32, %c0_i32_0 : i32, i32
  }
  func.func @transform_4(%arg0: i32) -> i32 {
    %c0_i32 = arith.constant 0 : i32
    %c0_i32_0 = arith.constant 0 : i32
    return %c0_i32 : i32
  }
  func.func @transform_5(%arg0: i32) -> (i32, i32) {
    %c0_i32 = arith.constant 0 : i32
    %c0_i32_0 = arith.constant 0 : i32
    return %arg0, %c0_i32 : i32, i32
  }
}

</mosaic_0001>

<llo_original>
// kernel: tpu_custom_call.1
$region0: #{tpu_custom_call.1}
  #allocation0 [shape = 'u32[]', space=smem, size = 0x4, offset = 0x4, fixed_abs, tag = 'smem constant byte address 0x4 - core index']
  #allocation1 [shape = 'u32[144,128]{1,0:T(1,128)}', space=vmem, size = 0x12000, scoped, tag = 'internal scratch']
  #allocation2 [shape = 'f32[1]{0:T(128)S(6)}', space=smem, size = 0x200, scoped, tag = 'scoped memory for tpu_custom_call.1']
  %s0 = inlined_call_operand.vmem [shape: f32[2,2], index: 0, kind: input, shape index: {}]
  %s1 = inlined_call_operand.hbm [shape: f32[2,32], index: 1, kind: input, shape index: {}]
  %s2 = inlined_call_operand.vmem [shape: f32[1,32], index: 2, kind: input, shape index: {}]
  %s3 = inlined_call_operand.vmem [shape: f32[1,32], index: 3, kind: input, shape index: {}]
  %s4 = inlined_call_operand.<no memory space> [shape: f32[1], index: 4, kind: input, shape index: {}]
  %s5 = inlined_call_operand.vmem [shape: f32[2,1], index: 5, kind: output, shape index: {}]
  %s6 = sld [smem:[#allocation0]]
  $region34: #{tpu_custom_call.1} parent=0
    _
  %s8 = ssub.s32 1, %s6
  %s9 = scalar_select 0, %s8, %s6
  %10 = sst [smem:[#allocation2]] %s4
  $region1: #{tpu_custom_call.1} parent=0
    #allocation3 [shape = 'u8[1024]{0}', space=vmem, size = 0x400, scoped, tag = 'input window, operand 1, single buffered']
    #allocation4 [shape = 's32[1]{0}', space=sflag, size = 0x4, scoped, tag = 'scoped memory for tpu_custom_call.1']
    %11 = vsyncpa [#allocation4], 0
    // Predicated region
    $region2: #{tpu_custom_call.1} parent=1 // pred_check
      _
    $region3: #{tpu_custom_call.1} parent=1 // pred_check_branch
      %13 = sbr.rel (0) target = $region5
    $region4: #{tpu_custom_call.1} parent=1 // pred_region
      _
    $region5: #{tpu_custom_call.1} parent=1 // pred_fallthru
      _
    // Predicated region
    $region6: #{tpu_custom_call.1} parent=1 // pred_check
      _
    $region7: #{tpu_custom_call.1} parent=1 // pred_check_branch
      %15 = sbr.rel (0) target = $region9
    $region8: #{tpu_custom_call.1} parent=1 // pred_region
      %s17 = ssub.s32 32, 32
      %18 = vsyncadd [#allocation4], %s17
      %s20 = sshll.u32 [#allocation3], 4
      %s21 = int_to_ptr.vmem [resolvable:$true] %s20
      %23 = dma.hbm_to_vmem [thread:$0]  %s1, 32, %s21, [#allocation4]
    $region9: #{tpu_custom_call.1} parent=1 // pred_fallthru
      _
    // Predicated region
    $region10: #{tpu_custom_call.1} parent=1 // pred_check
      _
    $region11: #{tpu_custom_call.1} parent=1 // pred_check_branch
      %25 = sbr.rel (0) target = $region13
    $region12: #{tpu_custom_call.1} parent=1 // pred_region
      _
    $region13: #{tpu_custom_call.1} parent=1 // pred_fallthru
      _
    // Predicated region
    $region14: #{tpu_custom_call.1} parent=1 // pred_check
      _
    $region15: #{tpu_custom_call.1} parent=1 // pred_check_branch
      %27 = sbr.rel (0) target = $region17
    $region16: #{tpu_custom_call.1} parent=1 // pred_region
      _
    $region17: #{tpu_custom_call.1} parent=1 // pred_fallthru
      _
    // Predicated region
    $region18: #{tpu_custom_call.1} parent=1 // pred_check
      _
    $region19: #{tpu_custom_call.1} parent=1 // pred_check_branch
      %29 = sbr.rel (0) target = $region21
    $region20: #{tpu_custom_call.1} parent=1 // pred_region
      _
    $region21: #{tpu_custom_call.1} parent=1 // pred_fallthru
      _
    // Predicated region
    $region22: #{tpu_custom_call.1} parent=1 // pred_check
      _
    $region23: #{tpu_custom_call.1} parent=1 // pred_check_branch
      %31 = sbr.rel (0) target = $region25
    $region24: #{tpu_custom_call.1} parent=1 // pred_region
      %32 = dma.done [#allocation4], 32
    $region25: #{tpu_custom_call.1} parent=1 // pred_fallthru
      _
    %v33 = vld [vmem:[%s0] sm:$0x3]
    %v34 = vld [vmem:[#allocation3] sm:$0x3]
    %v35 = vld [vmem:[%s2] sm:$0x1]
    %v37 = vlaneseq
    %v38 = vshrl.u32 %v37, 7
    %v39 = vsub.s32 0, %v38
    %v40 = vrot.slane %v35, %v39
    %vm42 = vcmask 15360
    %v44 = vsel %vm42, %v33, 0
    %vm46 = vcmask 1041408
    %v48 = vsel %vm46, %v34, 0
    %50 = vmatprep.subr.mxu0 0.0
    %51 = vmatpush1.msra.mxu0 0.0
    %52 = vmatprep.subr.mxu0 0.0
    %53 = vmatpush1.msra.mxu0 0.0
    %54 = vmatprep.subr.mxu0 0.0
    %55 = vmatpush1.msra.mxu0 0.0
    %56 = vmatprep.subr.mxu0 0.0
    %57 = vmatpush1.msra.mxu0 0.0
    %58 = vmatprep.subr.mxu0 0.0
    %59 = vmatpush1.msra.mxu0 0.0
    %60 = vmatprep.subr.mxu0 0.0
    %61 = vmatpush1.msra.mxu0 0.0
    %62 = vmatprep.subr.mxu0 0.0
    %63 = vmatpush1.msra.mxu0 0.0
    %64 = vmatprep.subr.mxu0 0.0
    %65 = vmatpush1.msra.mxu0 0.0
    %66 = vmatprep.subr.mxu0 0.0
    %67 = vmatpush1.msra.mxu0 0.0
    %68 = vmatprep.subr.mxu0 0.0
    %69 = vmatpush1.msra.mxu0 0.0
    %70 = vmatprep.subr.mxu0 0.0
    %71 = vmatpush1.msra.mxu0 0.0
    %72 = vmatprep.subr.mxu0 0.0
    %73 = vmatpush1.msra.mxu0 0.0
    %74 = vmatprep.subr.mxu0 0.0
    %75 = vmatpush1.msra.mxu0 0.0
    %76 = vmatprep.subr.mxu0 0.0
    %77 = vmatpush1.msra.mxu0 0.0
    %78 = vmatprep.subr.mxu0 0.0
    %79 = vmatpush1.msra.mxu0 0.0
    %80 = vmatprep.subr.mxu0 0.0
    %81 = vmatpush1.msra.mxu0 %v48
    %82 = vmatprep.subr.mxu0 0.0
    %83 = vmatpush2.msra.mxu0 0.0
    %84 = vmatprep.subr.mxu0 0.0
    %85 = vmatpush2.msra.mxu0 0.0
    %86 = vmatprep.subr.mxu0 0.0
    %87 = vmatpush2.msra.mxu0 0.0
    %88 = vmatprep.subr.mxu0 0.0
    %89 = vmatpush2.msra.mxu0 0.0
    %90 = vmatprep.subr.mxu0 0.0
    %91 = vmatpush2.msra.mxu0 0.0
    %92 = vmatprep.subr.mxu0 0.0
    %93 = vmatpush2.msra.mxu0 0.0
    %94 = vmatprep.subr.mxu0 0.0
    %95 = vmatpush2.msra.mxu0 0.0
    %96 = vmatprep.subr.mxu0 0.0
    %97 = vmatpush2.msra.mxu0 0.0
    %98 = vmatprep.subr.mxu0 0.0
    %99 = vmatpush2.msra.mxu0 0.0
    %100 = vmatprep.subr.mxu0 0.0
    %101 = vmatpush2.msra.mxu0 0.0
    %102 = vmatprep.subr.mxu0 0.0
    %103 = vmatpush2.msra.mxu0 0.0
    %104 = vmatprep.subr.mxu0 0.0
    %105 = vmatpush2.msra.mxu0 0.0
    %106 = vmatprep.subr.mxu0 0.0
    %107 = vmatpush2.msra.mxu0 0.0
    %108 = vmatprep.subr.mxu0 0.0
    %109 = vmatpush2.msra.mxu0 0.0
    %110 = vmatprep.subr.mxu0 0.0
    %111 = vmatpush2.msra.mxu0 0.0
    %112 = vmatprep.subr.mxu0 0.0
    %113 = vmatpush2.msra.mxu0 0.0
    %114 = vmatprep.mubr.f32.mxu0 0.0
    %115 = vmatmul.mubr.f32.gmra.mxu0 %v44
    %v116 = vpop.f32.mrf.mxu0
    %v117 = vadd.f32 %v40, %v116
    %v118 = vpop.f32.mrf.mxu0
    %119 = vdwg.mxu0
    %v120 = vmax.f32 %v117, 0.0
    %v121 = vld [vmem:[%s3] sm:$0x1]
    %v123 = vlaneseq
    %v124 = vshrl.u32 %v123, 7
    %v125 = vsub.s32 0, %v124
    %v126 = vrot.slane %v121, %v125
    %v128 = vmul.f32 %v120, %v126
    %vm129 = vcmask 254976
    %v130 = vsel %vm129, %v128, 0.0
    %131 = vadd.xlane.f32.xlu0 %v130
    %v132 = vpop.xlane.xlu0 %131
    %s133 = sld [smem:[#allocation2]]
    %v134 = vstv %s133
    %v135 = vadd.f32 %v132, %v134
    %vm136 = vcmask 1024
    %137 = vst.msk [vmem:[%s5] sm:$0x3] %vm136, %v135
    // Predicated region
    $region26: #{tpu_custom_call.1} parent=1 // pred_check
      _
    $region27: #{tpu_custom_call.1} parent=1 // pred_check_branch
      %139 = sbr.rel (0) target = $region29
    $region28: #{tpu_custom_call.1} parent=1 // pred_region
      _
    $region29: #{tpu_custom_call.1} parent=1 // pred_fallthru
      _
    // Predicated region
    $region30: #{tpu_custom_call.1} parent=1 // pred_check
      _
    $region31: #{tpu_custom_call.1} parent=1 // pred_check_branch
      %141 = sbr.rel (0) target = $region33
    $region32: #{tpu_custom_call.1} parent=1 // pred_region
      _
    $region33: #{tpu_custom_call.1} parent=1 // pred_fallthru
      _
    %142 = vsyncpa [#allocation4], 1

</llo_original>
